<compile_context>
chip_gen: v5e
topology: v5e:2x2
jax: 0.10.0
libtpu: 0.0.40
codegen_flags: <defaults>
</compile_context>

<pallas_src>
import functools

import jax
import jax.numpy as jnp
from jax.experimental import pallas as pl
from jax.experimental.pallas import tpu as pltpu


def _round_up(n, m):
    return ((n + m - 1) // m) * m


def _bandit_fwd_kernel(x_ref, p1_ref, p2_ref, out_ref, *, apply_softmax: bool):
    dim = p1_ref.shape[0] - 1       # fc1 input features
    hidden = p2_ref.shape[0] - 1    # fc1 output / fc2 input features (32)

    p1 = p1_ref[...]                # [dim+1, hidden]     = [W1^T ; b1]
    w1t = p1[:dim, :]               # [dim, hidden]
    b1 = p1[dim:, :]                # [1, hidden]
    p2 = p2_ref[...]                # [hidden+1, A]       = [W2^T ; b2]
    w2t = p2[:hidden, :]            # [hidden, A]
    b2 = p2[hidden:, :]             # [1, A]

    x = x_ref[...]                  # [tb, dim]  (f32 or bf16; promoted in-vreg)

    # fc1 + ReLU: [tb, hidden]
    h = jnp.dot(x, w1t, preferred_element_type=jnp.float32) + b1
    h = jnp.maximum(h, 0.0)
    # fc2: [tb, n_actions]
    logits = jnp.dot(h, w2t, preferred_element_type=jnp.float32) + b2

    if apply_softmax:  # PPO: softmax over the action axis (last axis)
        m = jnp.max(logits, axis=-1, keepdims=True)
        e = jnp.exp(logits - m)
        s = jnp.sum(e, axis=-1, keepdims=True)
        out_ref[...] = (e / s).astype(out_ref.dtype)     # exact normalization
    else:
        out_ref[...] = logits.astype(out_ref.dtype)


def pack_params(w1, b1, w2, b2):
    """One-time glue (hoist out of the per-call path): fold biases into the
    transposed weight blocks so the kernel works directly in the natural
    [batch, feature] layout: h = x @ W1^T + b1, logits = h @ W2^T + b2.
    """
    p1t = jnp.concatenate(
        [jnp.asarray(w1, jnp.float32).T,
         jnp.asarray(b1, jnp.float32).reshape(1, -1)], axis=0)   # [dim+1, 32]
    p2t = jnp.concatenate(
        [jnp.asarray(w2, jnp.float32).T,
         jnp.asarray(b2, jnp.float32).reshape(1, -1)], axis=0)   # [33, A]
    return p1t, p2t


@functools.partial(jax.jit, static_argnames=("algorithm", "block_batch"))
def bandit_forward(x, p1t, p2t, *, algorithm: str = "Greedy",
                   block_batch: int = 16384):
    """Pallas implementation of BanditModel.forward.

    Args:
      x:   [batch, dim] contexts (float32 or bfloat16; other dtypes cast to f32).
      p1t: [dim+1, 32]  packed fc1 params from pack_params().
      p2t: [n_actions_dim+1? no: [33, n_actions]] packed fc2 params.
      algorithm: 'PPO' adds the softmax over actions; others return raw rewards.
    Returns:
      [batch, n_actions] float32 (action probabilities for PPO).
    """
    x = jnp.asarray(x)
    if x.dtype not in (jnp.float32, jnp.bfloat16):
        x = x.astype(jnp.float32)

    batch, dim = x.shape
    hidden = p1t.shape[1]
    n_actions = p2t.shape[1]
    assert p1t.shape == (dim + 1, hidden)
    assert p2t.shape == (hidden + 1, n_actions)

    # Batch tile (sublane axis): multiple of 8, capped at block_batch, and at
    # ceil(batch/2) so the grid has >=2 steps whenever batch allows it (keeps
    # both v7x TensorCores busy under dimension_semantics=("parallel",)).
    block_batch = max(8, (int(block_batch) // 8) * 8)
    tb = min(block_batch, _round_up(pl.cdiv(batch, 2), 8))
    grid = (pl.cdiv(batch, tb),)

    kernel = functools.partial(_bandit_fwd_kernel,
                               apply_softmax=(algorithm == "PPO"))

    cost = pl.CostEstimate(
        flops=2 * batch * (dim * hidden + hidden * n_actions),
        transcendentals=(batch * n_actions if algorithm == "PPO" else 0),
        bytes_accessed=(x.size * x.dtype.itemsize
                        + batch * n_actions * 4
                        + (p1t.size + p2t.size) * 4),
    )

    out = pl.pallas_call(
        kernel,
        out_shape=jax.ShapeDtypeStruct((batch, n_actions), jnp.float32),
        grid=grid,
        in_specs=[
            pl.BlockSpec((tb, dim), lambda i: (i, 0)),                 # x row-tile (contiguous DMA)
            pl.BlockSpec((dim + 1, hidden), lambda i: (0, 0)),         # fc1 params (resident)
            pl.BlockSpec((hidden + 1, n_actions), lambda i: (0, 0)),   # fc2 params (resident)
        ],
        out_specs=pl.BlockSpec((tb, n_actions), lambda i: (i, 0)),
        compiler_params=pltpu.CompilerParams(
            dimension_semantics=("parallel",),        # shard batch tiles across TCs (v7x)
            vmem_limit_bytes=32 * 1024 * 1024,        # safe on v5e/v6e/v7x scoped VMEM
        ),
        cost_estimate=cost,
    )(x, p1t, p2t)

    return out


def _reference_forward(x, w1, b1, w2, b2, algorithm):
    h = jnp.maximum(x @ w1.T + b1, 0.0)
    logits = h @ w2.T + b2
    if algorithm == "PPO":
        return jax.nn.softmax(logits, axis=1)
    return logits


if __name__ == "__main__":
    # Small shapes consistent with the module: dim -> 32 hidden -> n_actions.
    batch, dim, hidden, n_actions = 8, 16, 32, 4

    key = jax.random.PRNGKey(0)
    kx, k1, k2, k3, k4 = jax.random.split(key, 5)

    x = jax.random.normal(kx, (batch, dim), dtype=jnp.float32)
    # Deterministic synthetic parameters (PyTorch Linear shapes: [out, in]).
    w1 = 0.1 * jax.random.normal(k1, (hidden, dim), dtype=jnp.float32)
    b1 = 0.1 * jax.random.normal(k2, (hidden,), dtype=jnp.float32)
    w2 = 0.1 * jax.random.normal(k3, (n_actions, hidden), dtype=jnp.float32)
    b2 = 0.1 * jax.random.normal(k4, (n_actions,), dtype=jnp.float32)

    # One-time parameter packing (hoisted glue).
    p1t, p2t = pack_params(w1, b1, w2, b2)

    # Non-PPO path: raw predicted rewards.
    out_greedy = jax.block_until_ready(
        bandit_forward(x, p1t, p2t, algorithm="Greedy"))
    # PPO path: softmax over actions.
    out_ppo = jax.block_until_ready(
        bandit_forward(x, p1t, p2t, algorithm="PPO"))

    ref_greedy = _reference_forward(x, w1, b1, w2, b2, "Greedy")
    ref_ppo = _reference_forward(x, w1, b1, w2, b2, "PPO")

    assert out_greedy.shape == (batch, n_actions)
    assert out_ppo.shape == (batch, n_actions)
    assert jnp.allclose(out_greedy, ref_greedy, atol=1e-5, rtol=1e-5)
    assert jnp.allclose(out_ppo, ref_ppo, atol=1e-5, rtol=1e-5)
    # Exact softmax normalization now -> rows sum to 1 to float rounding.
    assert jnp.allclose(jnp.sum(out_ppo, axis=1), 1.0, atol=1e-5)

    # TODO(synk): act() exploration policies and update_batch() (Adam optimizer
    # state + autograd training loop) are host-side training logic; only the
    # forward inference path is implemented as a kernel.

    print("KERNEL_OK")
</pallas_src>

<mosaic_0001>
module attributes {stable_mosaic.version = 11 : i64} {
  func.func @_bandit_fwd_kernel(%arg0: i32, %arg1: memref<8x16xf32, #tpu.memory_space<vmem>>, %arg2: memref<17x32xf32, #tpu.memory_space<vmem>>, %arg3: memref<33x4xf32, #tpu.memory_space<vmem>>, %arg4: memref<8x4xf32, #tpu.memory_space<vmem>>) attributes {dimension_semantics = [#tpu.dimension_semantics<parallel>], iteration_bounds = array<i64: 1>, scalar_prefetch = 0 : i64, scratch_operands = 0 : i64, tpu.core_type = #tpu.core_type<tc>, window_params = [{transform_indices = @transform_0, window_bounds = array<i64: 8, 16>}, {pipeline_mode = #tpu.pipeline_mode<synchronous>, transform_indices = @transform_1, window_bounds = array<i64: 17, 32>}, {pipeline_mode = #tpu.pipeline_mode<synchronous>, transform_indices = @transform_2, window_bounds = array<i64: 33, 4>}, {transform_indices = @transform_3, window_bounds = array<i64: 8, 4>}]} {
    %c0 = arith.constant 0 : index
    %c0_0 = arith.constant 0 : index
    %0 = vector.load %arg2[%c0, %c0_0] : memref<17x32xf32, #tpu.memory_space<vmem>>, vector<17x32xf32>
    %1 = vector.extract_strided_slice %0 {offsets = [0, 0], sizes = [16, 32], strides = [1, 1]} : vector<17x32xf32> to vector<16x32xf32>
    %2 = vector.extract_strided_slice %0 {offsets = [16, 0], sizes = [1, 32], strides = [1, 1]} : vector<17x32xf32> to vector<1x32xf32>
    %c0_1 = arith.constant 0 : index
    %c0_2 = arith.constant 0 : index
    %3 = vector.load %arg3[%c0_1, %c0_2] : memref<33x4xf32, #tpu.memory_space<vmem>>, vector<33x4xf32>
    %4 = vector.extract_strided_slice %3 {offsets = [0, 0], sizes = [32, 4], strides = [1, 1]} : vector<33x4xf32> to vector<32x4xf32>
    %5 = vector.extract_strided_slice %3 {offsets = [32, 0], sizes = [1, 4], strides = [1, 1]} : vector<33x4xf32> to vector<1x4xf32>
    %c0_3 = arith.constant 0 : index
    %c0_4 = arith.constant 0 : index
    %6 = vector.load %arg1[%c0_3, %c0_4] : memref<8x16xf32, #tpu.memory_space<vmem>>, vector<8x16xf32>
    %cst = arith.constant dense<0.000000e+00> : vector<8x32xf32>
    %7 = tpu.matmul %6, %1, %cst {dimension_numbers = #tpu.dot_dimension_numbers<[1], [0], [0], [1], [0, 0, 1, 1], [], []>} : vector<8x16xf32>, vector<16x32xf32>, vector<8x32xf32> -> vector<8x32xf32>
    %8 = vector.broadcast %2 : vector<1x32xf32> to vector<8x32xf32>
    %9 = arith.addf %7, %8 : vector<8x32xf32>
    %cst_5 = arith.constant 0.000000e+00 : f32
    %10 = vector.broadcast %cst_5 : f32 to vector<8x32xf32>
    %11 = arith.maximumf %9, %10 : vector<8x32xf32>
    %cst_6 = arith.constant dense<0.000000e+00> : vector<8x4xf32>
    %12 = tpu.matmul %11, %4, %cst_6 {dimension_numbers = #tpu.dot_dimension_numbers<[1], [0], [0], [1], [0, 0, 1, 1], [], []>} : vector<8x32xf32>, vector<32x4xf32>, vector<8x4xf32> -> vector<8x4xf32>
    %13 = vector.broadcast %5 : vector<1x4xf32> to vector<8x4xf32>
    %14 = arith.addf %12, %13 : vector<8x4xf32>
    %c0_7 = arith.constant 0 : index
    %c0_8 = arith.constant 0 : index
    %15 = vector.load %arg4[%c0_7, %c0_8] : memref<8x4xf32, #tpu.memory_space<vmem>>, vector<8x4xf32>
    tpu.vector_store %arg4[%c0_7, %c0_8], %14 {strides = array<i32>} : memref<8x4xf32, #tpu.memory_space<vmem>>, vector<8x4xf32>,
    return
  }
  func.func @transform_0(%arg0: i32) -> (i32, i32) {
    %c0_i32 = arith.constant 0 : i32
    %c0_i32_0 = arith.constant 0 : i32
    return %arg0, %c0_i32 : i32, i32
  }
  func.func @transform_1(%arg0: i32) -> (i32, i32) {
    %c0_i32 = arith.constant 0 : i32
    %c0_i32_0 = arith.constant 0 : i32
    %c0_i32_1 = arith.constant 0 : i32
    return %c0_i32, %c0_i32_0 : i32, i32
  }
  func.func @transform_2(%arg0: i32) -> (i32, i32) {
    %c0_i32 = arith.constant 0 : i32
    %c0_i32_0 = arith.constant 0 : i32
    %c0_i32_1 = arith.constant 0 : i32
    return %c0_i32, %c0_i32_0 : i32, i32
  }
  func.func @transform_3(%arg0: i32) -> (i32, i32) {
    %c0_i32 = arith.constant 0 : i32
    %c0_i32_0 = arith.constant 0 : i32
    return %arg0, %c0_i32 : i32, i32
  }
}

</mosaic_0001>

<llo_original>
// kernel: bandit_forward.1
$region0: #{bandit_forward.1}
  #allocation0 [shape = 'u32[]', space=smem, size = 0x4, offset = 0x4, fixed_abs, tag = 'smem constant byte address 0x4 - core index']
  #allocation1 [shape = 'u32[72,128]{1,0:T(1,128)}', space=vmem, size = 0x9000, scoped, tag = 'internal scratch']
  %s0 = inlined_call_operand.vmem [shape: f32[8,16], index: 0, kind: input, shape index: {}]
  %s1 = inlined_call_operand.vmem [shape: f32[17,32], index: 1, kind: input, shape index: {}]
  %s2 = inlined_call_operand.vmem [shape: f32[33,4], index: 2, kind: input, shape index: {}]
  %s3 = inlined_call_operand.vmem [shape: f32[8,4], index: 3, kind: output, shape index: {}]
  %s4 = sld [smem:[#allocation0]]
  $region22: #{bandit_forward.1} parent=0
    _
  %s6 = ssub.s32 1, %s4
  %s7 = scalar_select 0, %s6, %s4
  // Predicated region
  $region2: #{bandit_forward.1} parent=0 // pred_check
    _
  $region3: #{bandit_forward.1} parent=0 // pred_check_branch
    %9 = sbr.rel (0) target = $region5
  $region4: #{bandit_forward.1} parent=0 // pred_region
    _
  $region5: #{bandit_forward.1} parent=0 // pred_fallthru
    _
  // Predicated region
  $region6: #{bandit_forward.1} parent=0 // pred_check
    _
  $region7: #{bandit_forward.1} parent=0 // pred_check_branch
    %11 = sbr.rel (0) target = $region9
  $region8: #{bandit_forward.1} parent=0 // pred_region
    _
  $region9: #{bandit_forward.1} parent=0 // pred_fallthru
    _
  // Predicated region
  $region10: #{bandit_forward.1} parent=0 // pred_check
    _
  $region11: #{bandit_forward.1} parent=0 // pred_check_branch
    %13 = sbr.rel (0) target = $region13
  $region12: #{bandit_forward.1} parent=0 // pred_region
    _
  $region13: #{bandit_forward.1} parent=0 // pred_fallthru
    _
  %v14 = vld [vmem:[%s1] sm:$0xff]
  %v15 = vld [vmem:[%s1 + $0x8] sm:$0xff]
  %v16 = vld [vmem:[%s1 + $0x10] sm:$0x1]
  %v17 = vld [vmem:[%s2] sm:$0xff]
  %v18 = vld [vmem:[%s2 + $0x8] sm:$0xff]
  %v19 = vld [vmem:[%s2 + $0x10] sm:$0xff]
  %v20 = vld [vmem:[%s2 + $0x18] sm:$0xff]
  %v21 = vld [vmem:[%s2 + $0x20] sm:$0x1]
  %v22 = vld [vmem:[%s0] sm:$0xff]
  %v23 = vperm.slane %v16, 0
  %vm24 = vcmask 130048
  %v26 = vsel %vm24, %v22, 0
  %28 = vmatpush.msra.mxu0 0.0
  %29 = vmatpush.msra.mxu0 0.0
  %30 = vmatpush.msra.mxu0 0.0
  %31 = vmatpush.msra.mxu0 0.0
  %32 = vmatpush.msra.mxu0 0.0
  %33 = vmatpush.msra.mxu0 0.0
  %34 = vmatpush.msra.mxu0 0.0
  %35 = vmatpush.msra.mxu0 0.0
  %36 = vmatpush.msra.mxu0 0.0
  %37 = vmatpush.msra.mxu0 0.0
  %38 = vmatpush.msra.mxu0 0.0
  %39 = vmatpush.msra.mxu0 0.0
  %40 = vmatpush.msra.mxu0 0.0
  %41 = vmatpush.msra.mxu0 0.0
  %42 = vmatpush.msra.mxu0 %v15
  %43 = vmatpush.msra.mxu0 %v14
  %44 = vmatmul.f32.gmra.mxu0 %v26
  %v45 = vpop.f32.mrf.mxu0
  %v46 = vadd.f32 %v23, %v45
  %47 = vdwg.mxu0
  %v48 = vmax.f32 %v46, 0.0
  %v49 = vperm.slane %v21, 0
  %vm50 = vcmask 261120
  %v52 = vsel %vm50, %v48, 0
  %54 = vmatpush.msra.mxu0 0.0
  %55 = vmatpush.msra.mxu0 0.0
  %56 = vmatpush.msra.mxu0 0.0
  %57 = vmatpush.msra.mxu0 0.0
  %58 = vmatpush.msra.mxu0 0.0
  %59 = vmatpush.msra.mxu0 0.0
  %60 = vmatpush.msra.mxu0 0.0
  %61 = vmatpush.msra.mxu0 0.0
  %62 = vmatpush.msra.mxu0 0.0
  %63 = vmatpush.msra.mxu0 0.0
  %64 = vmatpush.msra.mxu0 0.0
  %65 = vmatpush.msra.mxu0 0.0
  %66 = vmatpush.msra.mxu0 %v20
  %67 = vmatpush.msra.mxu0 %v19
  %68 = vmatpush.msra.mxu0 %v18
  %69 = vmatpush.msra.mxu0 %v17
  %70 = vmatmul.f32.gmra.mxu0 %v52
  %v71 = vpop.f32.mrf.mxu0
  %v72 = vadd.f32 %v49, %v71
  %73 = vdwg.mxu0
  %vm74 = vcmask 31744
  %75 = vst.msk [vmem:[%s3] sm:$0xff] %vm74, %v72
  // Predicated region
  $region14: #{bandit_forward.1} parent=0 // pred_check
    _
  $region15: #{bandit_forward.1} parent=0 // pred_check_branch
    %77 = sbr.rel (0) target = $region17
  $region16: #{bandit_forward.1} parent=0 // pred_region
    _
  $region17: #{bandit_forward.1} parent=0 // pred_fallthru
    _
  // Predicated region
  $region18: #{bandit_forward.1} parent=0 // pred_check
    _
  $region19: #{bandit_forward.1} parent=0 // pred_check_branch
    %79 = sbr.rel (0) target = $region21
  $region20: #{bandit_forward.1} parent=0 // pred_region
    _
  $region21: #{bandit_forward.1} parent=0 // pred_fallthru
    _

</llo_original>
